<compile_context>
chip_gen: v7x
topology: tpu7x:2x2x1
jax: 0.10.0
libtpu: 0.0.40
codegen_flags: <defaults>
</compile_context>

<pallas_src>
import functools

import jax
import jax.numpy as jnp
from jax import lax
from jax.experimental import pallas as pl
from jax.experimental.pallas import tpu as pltpu


def _tree_fold_rows(sq):
    """Fold a (k*8, C) f32 chunk into (8, C) with a tree of pure VPU adds."""
    groups = sq.shape[0] // 8
    parts = [sq[g * 8:(g + 1) * 8, :] for g in range(groups)]
    while len(parts) > 1:
        nxt = [parts[m] + parts[m + 1] for m in range(0, len(parts) - 1, 2)]
        if len(parts) % 2:
            nxt.append(parts[-1])
        parts = nxt
    return parts[0]


def _vae_loss_kernel(xr_ref, x_ref, mu_ref, lv_ref, out_ref, acc_ref, *,
                     steps, tile_rows, chunk_rows, n_full, rem,
                     valid_rows, needs_mask):
    # Bind grid queries ONLY at the top level (never inside pl.when bodies).
    i = pl.program_id(0)
    is_first = i == 0
    is_last = i == steps - 1
    row_base = i * tile_rows            # traced scalar, closed over below

    @pl.when(is_first)
    def _():
        acc_ref[...] = jnp.zeros_like(acc_ref)

    cols = acc_ref.shape[1]

    def masked_sq(xr, x, row0, nrows):
        d = xr.astype(jnp.float32) - x.astype(jnp.float32)
        sq = d * d
        if needs_mask:
            gid = row0 + lax.broadcasted_iota(jnp.int32, (nrows, cols), 0)
            sq = jnp.where(gid < valid_rows, sq, 0.0)
        return sq

    # Main chunked walk over the tile: small ref-sliced loads, (8, cols) carry.
    if n_full > 0:
        def body(j, carry):
            r0 = j * chunk_rows
            xr = xr_ref[pl.ds(r0, chunk_rows), :]
            x = x_ref[pl.ds(r0, chunk_rows), :]
            sq = masked_sq(xr, x, row_base + r0, chunk_rows)
            return carry + _tree_fold_rows(sq)

        carry = lax.fori_loop(0, n_full, body,
                              jnp.zeros((8, cols), jnp.float32),
                              unroll=min(4, n_full))
        acc_ref[...] += carry

    # Static remainder (< chunk_rows rows): one small slice per grid step.
    if rem > 0:
        r0 = n_full * chunk_rows
        xr = xr_ref[r0:r0 + rem, :]
        x = x_ref[r0:r0 + rem, :]
        sq = masked_sq(xr, x, row_base + r0, rem)
        acc_ref[0:1, :] += jnp.sum(sq, axis=0, keepdims=True)

    # Finalize once: single cross-lane/sublane reduce + tiny KLD term.
    @pl.when(is_last)
    def _():
        mse = jnp.sum(acc_ref[...], keepdims=True)                       # (1,1)
        mu = mu_ref[...].astype(jnp.float32)
        lv = lv_ref[...].astype(jnp.float32)
        kld = -0.5 * jnp.sum(1.0 + lv - mu * mu - jnp.exp(lv), keepdims=True)
        total = mse + kld
        out_ref[...] = jnp.broadcast_to(total, out_ref.shape).astype(out_ref.dtype)


def _pick_2d(a):
    """Free (no-copy) 2D view: lane-dense cols when the size allows."""
    n = a.size
    for c in (1024, 512, 256, 128):
        if n % c == 0:
            return jnp.reshape(a, (n // c, c))
    return jnp.reshape(a, (-1, a.shape[-1]))


def vae_loss(x_recon, x, mu, logvar, *, target_tile_bytes=4 * 1024 * 1024):
    """sum-MSE(x_recon, x) + KLD(mu, logvar); all heavy compute inside Pallas."""
    assert x_recon.shape == x.shape
    assert mu.shape == logvar.shape

    xr2 = _pick_2d(x_recon)
    x2 = _pick_2d(x)
    R, C = xr2.shape
    itemsize = xr2.dtype.itemsize

    # Tile rows: multiple of 32 (legal sublane tiling for f32/bf16/int8) sized
    # to ~target_tile_bytes per input, or the whole array (full-extent block).
    cap = max(32, (target_tile_bytes // (C * itemsize)) // 32 * 32)
    if R <= cap:
        tile_rows, steps = R, 1
    else:
        tile_rows, steps = cap, pl.cdiv(R, cap)
    needs_mask = (steps * tile_rows) != R

    # In-kernel chunk: multiple of 8 rows, ~64 KiB of f32 per operand slice.
    chunk_rows = max(8, (65536 // (C * 4)) // 8 * 8)
    n_full = tile_rows // chunk_rows
    rem = tile_rows - n_full * chunk_rows

    mu2 = jnp.reshape(mu, (-1, mu.shape[-1]))
    lv2 = jnp.reshape(logvar, (-1, logvar.shape[-1]))

    kernel = functools.partial(
        _vae_loss_kernel,
        steps=steps, tile_rows=tile_rows, chunk_rows=chunk_rows,
        n_full=n_full, rem=rem, valid_rows=R, needs_mask=needs_mask)

    img_spec = pl.BlockSpec((tile_rows, C), lambda i: (i, 0))
    lat_spec = pl.BlockSpec(mu2.shape, lambda i: (0, 0))   # resident, fetched once
    out_spec = pl.BlockSpec((8, 128), lambda i: (0, 0))

    n_elems = x_recon.size
    latent_elems = mu2.size
    cost = pl.CostEstimate(
        flops=3 * n_elems + 6 * latent_elems,
        transcendentals=latent_elems,
        bytes_accessed=2 * n_elems * itemsize
        + 2 * latent_elems * mu2.dtype.itemsize + 8 * 128 * 4,
    )

    out = pl.pallas_call(
        kernel,
        out_shape=jax.ShapeDtypeStruct((8, 128), jnp.float32),
        grid=(steps,),
        in_specs=[img_spec, img_spec, lat_spec, lat_spec],
        out_specs=out_spec,
        scratch_shapes=[pltpu.VMEM((8, C), jnp.float32)],
        compiler_params=pltpu.CompilerParams(
            dimension_semantics=("arbitrary",),
            vmem_limit_bytes=48 * 1024 * 1024,
        ),
        cost_estimate=cost,
    )(xr2, x2, mu2, lv2)

    return out[0, 0]


if __name__ == "__main__":
    key = jax.random.PRNGKey(0)
    k1, k2, k3, k4 = jax.random.split(key, 4)

    # Small VAE-style shapes: images (B, C, H, W), latents (B, Z).
    B, Cc, H, W, Z = 2, 4, 16, 16, 32
    x_recon = jax.random.normal(k1, (B, Cc, H, W), dtype=jnp.float32)
    x = jax.random.normal(k2, (B, Cc, H, W), dtype=jnp.float32)
    mu = jax.random.normal(k3, (B, Z), dtype=jnp.float32)
    logvar = 0.1 * jax.random.normal(k4, (B, Z), dtype=jnp.float32)

    loss = jax.block_until_ready(vae_loss(x_recon, x, mu, logvar))

    # Pure-JAX reference for sanity.
    ref_mse = jnp.sum((x_recon - x) ** 2)
    ref_kld = -0.5 * jnp.sum(1.0 + logvar - mu**2 - jnp.exp(logvar))
    ref = ref_mse + ref_kld
    assert jnp.allclose(loss, ref, rtol=1e-5, atol=1e-5), (loss, ref)

    print("KERNEL_OK")
</pallas_src>

<mosaic_0001>
module attributes {stable_mosaic.version = 11 : i64} {
  func.func @_vae_loss_kernel(%arg0: i32, %arg1: memref<2x1024xf32, #tpu.memory_space<vmem>>, %arg2: memref<2x1024xf32, #tpu.memory_space<vmem>>, %arg3: memref<2x32xf32, #tpu.memory_space<vmem>>, %arg4: memref<2x32xf32, #tpu.memory_space<vmem>>, %arg5: memref<8x128xf32, #tpu.memory_space<vmem>>, %arg6: memref<8x1024xf32, #tpu.memory_space<vmem>>) attributes {dimension_semantics = [#tpu.dimension_semantics<arbitrary>], iteration_bounds = array<i64: 1>, scalar_prefetch = 0 : i64, scratch_operands = 1 : i64, tpu.core_type = #tpu.core_type<tc>, window_params = [{transform_indices = @transform_0, window_bounds = array<i64: 2, 1024>}, {transform_indices = @transform_1, window_bounds = array<i64: 2, 1024>}, {pipeline_mode = #tpu.pipeline_mode<synchronous>, transform_indices = @transform_2, window_bounds = array<i64: 2, 32>}, {pipeline_mode = #tpu.pipeline_mode<synchronous>, transform_indices = @transform_3, window_bounds = array<i64: 2, 32>}, {pipeline_mode = #tpu.pipeline_mode<synchronous>, transform_indices = @transform_4, window_bounds = array<i64: 8, 128>}]} {
    %c0_i32 = arith.constant 0 : i32
    %0 = arith.cmpi eq, %arg0, %c0_i32 : i32
    %c0_i32_0 = arith.constant 0 : i32
    %1 = arith.cmpi eq, %arg0, %c0_i32_0 : i32
    %2 = arith.extui %0 : i1 to i32
    %c0_i32_1 = arith.constant 0 : i32
    %3 = arith.cmpi ne, %2, %c0_i32_1 : i32
    scf.if %3 {
      %cst_10 = arith.constant 0.000000e+00 : f32
      %15 = vector.broadcast %cst_10 : f32 to vector<8x1024xf32>
      %c0_11 = arith.constant 0 : index
      %c0_12 = arith.constant 0 : index
      %16 = vector.load %arg6[%c0_11, %c0_12] : memref<8x1024xf32, #tpu.memory_space<vmem>>, vector<8x1024xf32>
      tpu.vector_store %arg6[%c0_11, %c0_12], %15 {strides = array<i32>} : memref<8x1024xf32, #tpu.memory_space<vmem>>, vector<8x1024xf32>,
    } else {
    }
    %c0 = arith.constant 0 : index
    %c0_2 = arith.constant 0 : index
    %4 = vector.load %arg1[%c0, %c0_2] : memref<2x1024xf32, #tpu.memory_space<vmem>>, vector<2x1024xf32>
    %c0_3 = arith.constant 0 : index
    %c0_4 = arith.constant 0 : index
    %5 = vector.load %arg2[%c0_3, %c0_4] : memref<2x1024xf32, #tpu.memory_space<vmem>>, vector<2x1024xf32>
    %6 = arith.subf %4, %5 : vector<2x1024xf32>
    %7 = arith.mulf %6, %6 : vector<2x1024xf32>
    %c0_5 = arith.constant 0 : index
    %c0_6 = arith.constant 0 : index
    %8 = vector.load %arg6[%c0_5, %c0_6] : memref<8x1024xf32, #tpu.memory_space<vmem>>, vector<1x1024xf32>
    %cst = arith.constant dense<0.000000e+00> : vector<1024xf32>
    %9 = vector.multi_reduction <add>, %7, %cst [0] : vector<2x1024xf32> to vector<1024xf32>
    %10 = vector.shape_cast %9 : vector<1024xf32> to vector<1x1024xf32>
    %11 = arith.addf %8, %10 : vector<1x1024xf32>
    %c0_7 = arith.constant 0 : index
    %c0_8 = arith.constant 0 : index
    %12 = vector.load %arg6[%c0_7, %c0_8] : memref<8x1024xf32, #tpu.memory_space<vmem>>, vector<1x1024xf32>
    tpu.vector_store %arg6[%c0_7, %c0_8], %11 {strides = array<i32>} : memref<8x1024xf32, #tpu.memory_space<vmem>>, vector<1x1024xf32>,
    %13 = arith.extui %1 : i1 to i32
    %c0_i32_9 = arith.constant 0 : i32
    %14 = arith.cmpi ne, %13, %c0_i32_9 : i32
    scf.if %14 {
      %c0_10 = arith.constant 0 : index
      %c0_11 = arith.constant 0 : index
      %15 = vector.load %arg6[%c0_10, %c0_11] : memref<8x1024xf32, #tpu.memory_space<vmem>>, vector<8x1024xf32>
      %16 = vector.shape_cast %15 : vector<8x1024xf32> to vector<1x8x1024xf32>
      %cst_12 = arith.constant dense<0.000000e+00> : vector<1xf32>
      %17 = vector.multi_reduction <add>, %16, %cst_12 [1, 2] : vector<1x8x1024xf32> to vector<1xf32>
      %18 = vector.shape_cast %17 : vector<1xf32> to vector<1x1x1xf32>
      %19 = vector.extract %18[0, 0, 0] : f32 from vector<1x1x1xf32>
      %20 = vector.broadcast %19 : f32 to vector<1x1xf32>
      %c0_13 = arith.constant 0 : index
      %c0_14 = arith.constant 0 : index
      %21 = vector.load %arg3[%c0_13, %c0_14] : memref<2x32xf32, #tpu.memory_space<vmem>>, vector<2x32xf32>
      %c0_15 = arith.constant 0 : index
      %c0_16 = arith.constant 0 : index
      %22 = vector.load %arg4[%c0_15, %c0_16] : memref<2x32xf32, #tpu.memory_space<vmem>>, vector<2x32xf32>
      %cst_17 = arith.constant 1.000000e+00 : f32
      %23 = vector.broadcast %cst_17 : f32 to vector<2x32xf32>
      %24 = arith.addf %23, %22 : vector<2x32xf32>
      %25 = arith.mulf %21, %21 : vector<2x32xf32>
      %26 = arith.subf %24, %25 : vector<2x32xf32>
      %27 = math.exp %22 : vector<2x32xf32>
      %28 = arith.subf %26, %27 : vector<2x32xf32>
      %29 = vector.shape_cast %28 : vector<2x32xf32> to vector<1x2x32xf32>
      %cst_18 = arith.constant dense<0.000000e+00> : vector<1xf32>
      %30 = vector.multi_reduction <add>, %29, %cst_18 [1, 2] : vector<1x2x32xf32> to vector<1xf32>
      %31 = vector.shape_cast %30 : vector<1xf32> to vector<1x1x1xf32>
      %32 = vector.extract %31[0, 0, 0] : f32 from vector<1x1x1xf32>
      %33 = vector.broadcast %32 : f32 to vector<1x1xf32>
      %cst_19 = arith.constant -5.000000e-01 : f32
      %34 = vector.broadcast %cst_19 : f32 to vector<1x1xf32>
      %35 = arith.mulf %34, %33 : vector<1x1xf32>
      %36 = arith.addf %20, %35 : vector<1x1xf32>
      %37 = vector.shape_cast %36 : vector<1x1xf32> to vector<1x1xf32>
      %38 = vector.broadcast %37 : vector<1x1xf32> to vector<8x128xf32>
      %c0_20 = arith.constant 0 : index
      %c0_21 = arith.constant 0 : index
      %39 = vector.load %arg5[%c0_20, %c0_21] : memref<8x128xf32, #tpu.memory_space<vmem>>, vector<8x128xf32>
      tpu.vector_store %arg5[%c0_20, %c0_21], %38 {strides = array<i32>} : memref<8x128xf32, #tpu.memory_space<vmem>>, vector<8x128xf32>,
    } else {
    }
    return
  }
  func.func @transform_0(%arg0: i32) -> (i32, i32) {
    %c0_i32 = arith.constant 0 : i32
    %c0_i32_0 = arith.constant 0 : i32
    return %arg0, %c0_i32 : i32, i32
  }
  func.func @transform_1(%arg0: i32) -> (i32, i32) {
    %c0_i32 = arith.constant 0 : i32
    %c0_i32_0 = arith.constant 0 : i32
    return %arg0, %c0_i32 : i32, i32
  }
  func.func @transform_2(%arg0: i32) -> (i32, i32) {
    %c0_i32 = arith.constant 0 : i32
    %c0_i32_0 = arith.constant 0 : i32
    %c0_i32_1 = arith.constant 0 : i32
    return %c0_i32, %c0_i32_0 : i32, i32
  }
  func.func @transform_3(%arg0: i32) -> (i32, i32) {
    %c0_i32 = arith.constant 0 : i32
    %c0_i32_0 = arith.constant 0 : i32
    %c0_i32_1 = arith.constant 0 : i32
    return %c0_i32, %c0_i32_0 : i32, i32
  }
  func.func @transform_4(%arg0: i32) -> (i32, i32) {
    %c0_i32 = arith.constant 0 : i32
    %c0_i32_0 = arith.constant 0 : i32
    %c0_i32_1 = arith.constant 0 : i32
    return %c0_i32, %c0_i32_0 : i32, i32
  }
}

</mosaic_0001>

<llo_original>
// kernel: tpu_custom_call.1
$region0: #{tpu_custom_call.1}
  #allocation0 [shape = 'u32[]', space=smem, size = 0x4, offset = 0x4, fixed_abs, tag = 'smem constant byte address 0x4 - core index']
  #allocation1 [shape = 'u32[144,128]{1,0:T(1,128)}', space=vmem, size = 0x12000, scoped, tag = 'internal scratch']
  #allocation2 [shape = 'f32[8,1024]{1,0:T(8,128)}', space=vmem, size = 0x8000, scoped, tag = 'scratch operand']
  %s0 = inlined_call_operand.hbm [shape: f32[2,1024], index: 0, kind: input, shape index: {}]
  %s1 = inlined_call_operand.hbm [shape: f32[2,1024], index: 1, kind: input, shape index: {}]
  %s2 = inlined_call_operand.vmem [shape: f32[2,32], index: 2, kind: input, shape index: {}]
  %s3 = inlined_call_operand.vmem [shape: f32[2,32], index: 3, kind: input, shape index: {}]
  %s4 = inlined_call_operand.hbm [shape: f32[8,128], index: 4, kind: output, shape index: {}]
  %s5 = sld [smem:[#allocation0]]
  $region42: #{tpu_custom_call.1} parent=0
    _
  %s7 = ssub.s32 1, %s5
  %s8 = scalar_select 0, %s7, %s5
  $region1: #{tpu_custom_call.1} parent=0
    #allocation3 [shape = 'u8[8192]{0}', space=vmem, size = 0x2000, scoped, tag = 'input window, operand 0, single buffered']
    #allocation4 [shape = 's32[1]{0}', space=sflag, size = 0x4, scoped, tag = 'scoped memory for tpu_custom_call.1']
    #allocation5 [shape = 's32[1]{0}', space=sflag, size = 0x4, scoped, tag = 'scoped memory for tpu_custom_call.1']
    #allocation6 [shape = 'u8[8192]{0}', space=vmem, size = 0x2000, scoped, tag = 'input window, operand 1, single buffered']
    #allocation7 [shape = 's32[1]{0}', space=sflag, size = 0x4, scoped, tag = 'scoped memory for tpu_custom_call.1']
    #allocation8 [shape = 'u8[4096]{0}', space=vmem, size = 0x1000, scoped, tag = 'output window, operand 0, single buffered']
    %9 = vsyncpa [#allocation4], 0
    %10 = vsyncpa [#allocation7], 0
    %11 = vsyncpa [#allocation5], 0
    // Predicated region
    $region2: #{tpu_custom_call.1} parent=1 // pred_check
      _
    $region3: #{tpu_custom_call.1} parent=1 // pred_check_branch
      %13 = sbr.rel (0) target = $region5
    $region4: #{tpu_custom_call.1} parent=1 // pred_region
      %s15 = ssub.s32 256, 256
      %16 = vsyncadd [#allocation4], %s15
      %s18 = sshll.u32 [#allocation3], 4
      %s19 = int_to_ptr.vmem [resolvable:$true] %s18
      %21 = dma.hbm_to_vmem [thread:$0]  %s0, 256, %s19, [#allocation4]
    $region5: #{tpu_custom_call.1} parent=1 // pred_fallthru
      _
    // Predicated region
    $region6: #{tpu_custom_call.1} parent=1 // pred_check
      _
    $region7: #{tpu_custom_call.1} parent=1 // pred_check_branch
      %23 = sbr.rel (0) target = $region9
    $region8: #{tpu_custom_call.1} parent=1 // pred_region
      %s25 = ssub.s32 256, 256
      %26 = vsyncadd [#allocation7], %s25
      %s28 = sshll.u32 [#allocation6], 4
      %s29 = int_to_ptr.vmem [resolvable:$true] %s28
      %31 = dma.hbm_to_vmem [thread:$0]  %s1, 256, %s29, [#allocation7]
    $region9: #{tpu_custom_call.1} parent=1 // pred_fallthru
      _
    // Predicated region
    $region10: #{tpu_custom_call.1} parent=1 // pred_check
      _
    $region11: #{tpu_custom_call.1} parent=1 // pred_check_branch
      %33 = sbr.rel (0) target = $region13
    $region12: #{tpu_custom_call.1} parent=1 // pred_region
      _
    $region13: #{tpu_custom_call.1} parent=1 // pred_fallthru
      _
    // Predicated region
    $region14: #{tpu_custom_call.1} parent=1 // pred_check
      _
    $region15: #{tpu_custom_call.1} parent=1 // pred_check_branch
      %35 = sbr.rel (0) target = $region17
    $region16: #{tpu_custom_call.1} parent=1 // pred_region
      _
    $region17: #{tpu_custom_call.1} parent=1 // pred_fallthru
      _
    // Predicated region
    $region18: #{tpu_custom_call.1} parent=1 // pred_check
      _
    $region19: #{tpu_custom_call.1} parent=1 // pred_check_branch
      %37 = sbr.rel (0) target = $region21
    $region20: #{tpu_custom_call.1} parent=1 // pred_region
      %38 = dma.done [#allocation4], 256
    $region21: #{tpu_custom_call.1} parent=1 // pred_fallthru
      _
    // Predicated region
    $region22: #{tpu_custom_call.1} parent=1 // pred_check
      _
    $region23: #{tpu_custom_call.1} parent=1 // pred_check_branch
      %40 = sbr.rel (0) target = $region25
    $region24: #{tpu_custom_call.1} parent=1 // pred_region
      %41 = dma.done [#allocation7], 256
    $region25: #{tpu_custom_call.1} parent=1 // pred_fallthru
      _
    %p42 = scmp.eq.s32.totalorder 0, 0
    // Predicated region
    $region26: #{tpu_custom_call.1} parent=1 // pred_check
      %p43 = pneg %p42
    $region27: #{tpu_custom_call.1} parent=1 // pred_check_branch
      %45 = sbr.rel (%p43) target = $region29
    $region28: #{tpu_custom_call.1} parent=1 // pred_region
      %46 = vst [vmem:[#allocation2] sm:$0xff] 0.0
      %47 = vst [vmem:[#allocation2 + $0x8] sm:$0xff] 0.0
      %48 = vst [vmem:[#allocation2 + $0x10] sm:$0xff] 0.0
      %49 = vst [vmem:[#allocation2 + $0x18] sm:$0xff] 0.0
      %50 = vst [vmem:[#allocation2 + $0x20] sm:$0xff] 0.0
      %51 = vst [vmem:[#allocation2 + $0x28] sm:$0xff] 0.0
      %52 = vst [vmem:[#allocation2 + $0x30] sm:$0xff] 0.0
      %53 = vst [vmem:[#allocation2 + $0x38] sm:$0xff] 0.0
    $region29: #{tpu_custom_call.1} parent=1 // pred_fallthru
      _
    %v54 = vld [vmem:[#allocation3] sm:$0xff]
    %v55 = vld [vmem:[#allocation3 + $0x8] sm:$0xff]
    %v56 = vld [vmem:[#allocation6] sm:$0xff]
    %v57 = vld [vmem:[#allocation6 + $0x8] sm:$0xff]
    %v58 = vsub.f32 %v54, %v56
    %v59 = vsub.f32 %v55, %v57
    %v60 = vmul.f32 %v58, %v58
    %v61 = vmul.f32 %v59, %v59
    %v62 = vld [vmem:[#allocation2] ss:$8 sm:$0xf]
    %v63 = vld [vmem:[#allocation2] ss:$8 sm:$0xf0]
    %v64 = vor.u32 %v62, %v63
    %v67 = vcombine.high %v60, %v60
    %v69 = vunpack.c.l.s4 1983009808
    %v70 = vunpack.c.0.s8 %v69
    %v71 = vlaneseq
    %v72 = vshrl.u32 %v71, 7
    %v73 = vsub.s32 %v70, %v72
    %v74 = vrot.slane %v60, %v73
    %v76 = vunpack.c.l.s4 1983009808
    %v77 = vunpack.c.0.s8 %v76
    %v78 = vlaneseq
    %v79 = vshrl.u32 %v78, 7
    %v80 = vsub.s32 %v77, %v79
    %v81 = vrot.slane %v67, %v80
    %v82 = vcombine.high %v74, %v74
    %v83 = vcombine.high %v81, %v81
    %v84 = vcombine.high %v61, %v61
    %v86 = vunpack.c.l.s4 1983009808
    %v87 = vunpack.c.0.s8 %v86
    %v88 = vlaneseq
    %v89 = vshrl.u32 %v88, 7
    %v90 = vsub.s32 %v87, %v89
    %v91 = vrot.slane %v61, %v90
    %v93 = vunpack.c.l.s4 1983009808
    %v94 = vunpack.c.0.s8 %v93
    %v95 = vlaneseq
    %v96 = vshrl.u32 %v95, 7
    %v97 = vsub.s32 %v94, %v96
    %v98 = vrot.slane %v84, %v97
    %v99 = vcombine.high %v91, %v91
    %v100 = vcombine.high %v98, %v98
    %vm109 = vcmask 1041408
    %v110 = vsel %vm109, %v74, 0.0
    %v111 = vrot.slane %v110, 4
    %v112 = vadd.f32 %v110, %v111
    %v113 = vrot.slane %v112, 2
    %v114 = vadd.f32 %v112, %v113
    %v115 = vrot.slane %v114, 1
    %v116 = vadd.f32 %v114, %v115
    %v117 = vsel %vm109, %v82, 0.0
    %v118 = vrot.slane %v117, 4
    %v119 = vadd.f32 %v117, %v118
    %v120 = vrot.slane %v119, 2
    %v121 = vadd.f32 %v119, %v120
    %v122 = vrot.slane %v121, 1
    %v123 = vadd.f32 %v121, %v122
    %v124 = vsel %vm109, %v81, 0.0
    %v125 = vrot.slane %v124, 4
    %v126 = vadd.f32 %v124, %v125
    %v127 = vrot.slane %v126, 2
    %v128 = vadd.f32 %v126, %v127
    %v129 = vrot.slane %v128, 1
    %v130 = vadd.f32 %v128, %v129
    %v131 = vsel %vm109, %v83, 0.0
    %v132 = vrot.slane %v131, 4
    %v133 = vadd.f32 %v131, %v132
    %v134 = vrot.slane %v133, 2
    %v135 = vadd.f32 %v133, %v134
    %v136 = vrot.slane %v135, 1
    %v137 = vadd.f32 %v135, %v136
    %v138 = vsel %vm109, %v91, 0.0
    %v139 = vrot.slane %v138, 4
    %v140 = vadd.f32 %v138, %v139
    %v141 = vrot.slane %v140, 2
    %v142 = vadd.f32 %v140, %v141
    %v143 = vrot.slane %v142, 1
    %v144 = vadd.f32 %v142, %v143
    %v145 = vsel %vm109, %v99, 0.0
    %v146 = vrot.slane %v145, 4
    %v147 = vadd.f32 %v145, %v146
    %v148 = vrot.slane %v147, 2
    %v149 = vadd.f32 %v147, %v148
    %v150 = vrot.slane %v149, 1
    %v151 = vadd.f32 %v149, %v150
    %v152 = vsel %vm109, %v98, 0.0
    %v153 = vrot.slane %v152, 4
    %v154 = vadd.f32 %v152, %v153
    %v155 = vrot.slane %v154, 2
    %v156 = vadd.f32 %v154, %v155
    %v157 = vrot.slane %v156, 1
    %v158 = vadd.f32 %v156, %v157
    %v159 = vsel %vm109, %v100, 0.0
    %v160 = vrot.slane %v159, 4
    %v161 = vadd.f32 %v159, %v160
    %v162 = vrot.slane %v161, 2
    %v163 = vadd.f32 %v161, %v162
    %v164 = vrot.slane %v163, 1
    %v165 = vadd.f32 %v163, %v164
    %v174 = vcombine.low %v116, %v123
    %v175 = vcombine.low %v130, %v137
    %v176 = vcombine.low %v144, %v151
    %v177 = vcombine.low %v158, %v165
    %v179 = vunpack.c.l.s4 1966171168
    %v180 = vunpack.c.0.s8 %v179
    %v181 = vlaneseq
    %v182 = vshrl.u32 %v181, 7
    %v183 = vsub.s32 %v180, %v182
    %v184 = vrot.slane %v174, %v183
    %v186 = vunpack.c.l.s4 1966171168
    %v187 = vunpack.c.0.s8 %v186
    %v188 = vlaneseq
    %v189 = vshrl.u32 %v188, 7
    %v190 = vsub.s32 %v187, %v189
    %v191 = vrot.slane %v175, %v190
    %v193 = vunpack.c.l.s4 1966171168
    %v194 = vunpack.c.0.s8 %v193
    %v195 = vlaneseq
    %v196 = vshrl.u32 %v195, 7
    %v197 = vsub.s32 %v194, %v196
    %v198 = vrot.slane %v176, %v197
    %v200 = vunpack.c.l.s4 1966171168
    %v201 = vunpack.c.0.s8 %v200
    %v202 = vlaneseq
    %v203 = vshrl.u32 %v202, 7
    %v204 = vsub.s32 %v201, %v203
    %v205 = vrot.slane %v177, %v204
    %v206 = vcombine.low %v184, %v191
    %v207 = vcombine.low %v198, %v205
    %v209 = vunpack.c.l.s4 1966171168
    %v210 = vunpack.c.0.s8 %v209
    %v211 = vlaneseq
    %v212 = vshrl.u32 %v211, 7
    %v213 = vsub.s32 %v210, %v212
    %v214 = vrot.slane %v206, %v213
    %v216 = vunpack.c.l.s4 1966171168
    %v217 = vunpack.c.0.s8 %v216
    %v218 = vlaneseq
    %v219 = vshrl.u32 %v218, 7
    %v220 = vsub.s32 %v217, %v219
    %v221 = vrot.slane %v207, %v220
    %v222 = vcombine.low %v214, %v221
    %v224 = vadd.f32 %v64, %v222
    %225 = vst [vmem:[#allocation2] ss:$8 sm:$0xf] %v224
    %226 = vst [vmem:[#allocation2] ss:$8 sm:$0xf0] %v224
    // Predicated region
    $region30: #{tpu_custom_call.1} parent=1 // pred_check
      %p227 = pneg %p42
    $region31: #{tpu_custom_call.1} parent=1 // pred_check_branch
      %229 = sbr.rel (%p227) target = $region33
    $region32: #{tpu_custom_call.1} parent=1 // pred_region
      %v230 = vld [vmem:[#allocation2] sm:$0xff]
      %v231 = vld [vmem:[#allocation2 + $0x8] sm:$0xff]
      %v232 = vld [vmem:[#allocation2 + $0x10] sm:$0xff]
      %v233 = vld [vmem:[#allocation2 + $0x18] sm:$0xff]
      %v234 = vld [vmem:[#allocation2 + $0x20] sm:$0xff]
      %v235 = vld [vmem:[#allocation2 + $0x28] sm:$0xff]
      %v236 = vld [vmem:[#allocation2 + $0x30] sm:$0xff]
      %v237 = vld [vmem:[#allocation2 + $0x38] sm:$0xff]
      %v238 = vadd.f32 %v230, %v231
      %v239 = vadd.f32 %v238, %v232
      %v240 = vadd.f32 %v239, %v233
      %v241 = vadd.f32 %v240, %v234
      %v242 = vadd.f32 %v241, %v235
      %v243 = vadd.f32 %v242, %v236
      %v244 = vadd.f32 %v243, %v237
      %245 = vadd.xlane.f32.xlu0 %v244
      %v246 = vpop.xlane.xlu0 %245
      %v247 = vrot.slane %v246, 4
      %v248 = vadd.f32 %v246, %v247
      %v249 = vrot.slane %v248, 2
      %v250 = vadd.f32 %v248, %v249
      %v251 = vrot.slane %v250, 1
      %v252 = vadd.f32 %v250, %v251
      %s253 = vtos %v252
      %v254 = vstv %s253
      %v255 = vld [vmem:[%s2] sm:$0x3]
      %v256 = vld [vmem:[%s3] sm:$0x3]
      %v257 = vadd.f32 %v256, 1.0
      %v258 = vmul.f32 %v255, %v255
      %v259 = vsub.f32 %v257, %v258
      %v260 = vmul.f32 %v256, 1.442695
      %v261 = vpow.pop %v260
      %v262 = vsub.f32 %v259, %v261
      %vm263 = vcmask 254976
      %v264 = vsel %vm263, %v262, 0.0
      %265 = vadd.xlane.f32.xlu0 %v264
      %v266 = vpop.xlane.xlu0 %265
      %v267 = vrot.slane %v266, 4
      %v268 = vadd.f32 %v266, %v267
      %v269 = vrot.slane %v268, 2
      %v270 = vadd.f32 %v268, %v269
      %v271 = vrot.slane %v270, 1
      %v272 = vadd.f32 %v270, %v271
      %s273 = vtos %v272
      %v274 = vstv %s273
      %v275 = vmul.f32 %v274, -0.5
      %v276 = vadd.f32 %v254, %v275
      %277 = vst [vmem:[#allocation8] sm:$0xff] %v276
    $region33: #{tpu_custom_call.1} parent=1 // pred_fallthru
      _
    // Predicated region
    $region34: #{tpu_custom_call.1} parent=1 // pred_check
      _
    $region35: #{tpu_custom_call.1} parent=1 // pred_check_branch
      %279 = sbr.rel (0) target = $region37
    $region36: #{tpu_custom_call.1} parent=1 // pred_region
      %s281 = ssub.s32 128, 128
      %282 = vsyncadd [#allocation5], %s281
      %s284 = sshll.u32 [#allocation8], 4
      %s285 = int_to_ptr.vmem [resolvable:$true] %s284
      %287 = dma.vmem_to_hbm [thread:$0]  %s285, 128, %s4, [#allocation5]
    $region37: #{tpu_custom_call.1} parent=1 // pred_fallthru
      _
    // Predicated region
    $region38: #{tpu_custom_call.1} parent=1 // pred_check
      _
    $region39: #{tpu_custom_call.1} parent=1 // pred_check_branch
      %289 = sbr.rel (0) target = $region41
    $region40: #{tpu_custom_call.1} parent=1 // pred_region
      %290 = dma.done [#allocation5], 128
    $region41: #{tpu_custom_call.1} parent=1 // pred_fallthru
      _
    %291 = vsyncpa [#allocation4], 1
    %292 = vsyncpa [#allocation7], 1
    %293 = vsyncpa [#allocation5], 1

</llo_original>
